<compile_context>
chip_gen: v6e
topology: v6e:2x2x1
jax: 0.10.0
libtpu: 0.0.40
codegen_flags: <defaults>
</compile_context>

<pallas_src>
import functools

import jax
import jax.numpy as jnp
from jax.experimental import pallas as pl
from jax.experimental.pallas import tpu as pltpu


def _ls_ce_kernel(x_ref, t_ref, out_ref, acc_ref, *, smoothing, inv_temp,
                  n_rows, tile_rows, n_classes):
    i = pl.program_id(0)

    @pl.when(i == 0)
    def _init():
        acc_ref[0] = jnp.float32(0.0)

    # Upcast in-kernel (keeps bf16 in HBM); temperature as a multiply.
    xs = x_ref[...].astype(jnp.float32) * jnp.float32(inv_temp)     # (T, C)

    # Numerically stable per-row reductions; log_probs is never materialized.
    m = jnp.max(xs, axis=-1, keepdims=True)                          # (T, 1)
    shifted = xs - m                                                 # (T, C)
    lse = jnp.log(jnp.sum(jnp.exp(shifted), axis=-1, keepdims=True)) # (T, 1)
    s_sum = jnp.sum(shifted, axis=-1, keepdims=True)                 # (T, 1)

    # Gather shifted[i, target[i]] via one-hot compare (no dynamic gather).
    cls_ids = jax.lax.broadcasted_iota(jnp.int32, shifted.shape, dimension=1)
    onehot = cls_ids == t_ref[...]                                   # (T, C)
    s_tgt = jnp.sum(jnp.where(onehot, shifted, 0.0), axis=-1, keepdims=True)

    # nll    = lse - s_tgt
    # smooth = lse - s_sum / C
    # loss   = (1-s)*nll + s*smooth = lse - (1-s)*s_tgt - (s/C)*s_sum
    loss_row = lse - (jnp.float32(1.0 - smoothing) * s_tgt
                      + jnp.float32(smoothing / n_classes) * s_sum)  # (T, 1)

    # Mask rows past N in the (possibly partial) last tile.
    row_ids = i * tile_rows + jax.lax.broadcasted_iota(
        jnp.int32, loss_row.shape, dimension=0)
    loss_row = jnp.where(row_ids < n_rows, loss_row, 0.0)

    acc_ref[0] += jnp.sum(loss_row)

    @pl.when(i == pl.num_programs(0) - 1)
    def _finalize():
        out_ref[0, 0] = acc_ref[0] * jnp.float32(1.0 / n_rows)


def _choose_tile_rows(n, row_bytes, target_bytes=4 << 20):
    """~<=4 MiB of logits per tile (x2 double-buffer) -> fits default scoped
    VMEM on every generation; multiple of 16 (f32/bf16 sublane friendly)
    unless a single tile covers all rows."""
    rows = target_bytes // max(row_bytes, 1)
    rows = (int(max(16, min(1024, rows))) // 16) * 16
    if rows >= n:
        return n
    return rows


def label_smoothing_cross_entropy(x, target, smoothing=0.1, temperature=1.0,
                                  tile_rows=None):
    """x: (N, C) float logits, target: (N,) integer class ids -> scalar f32."""
    n, c = x.shape
    t2 = target.astype(jnp.int32).reshape(n, 1)
    if tile_rows is None:
        tile_rows = _choose_tile_rows(n, c * x.dtype.itemsize)
    grid = (pl.cdiv(n, tile_rows),)

    kernel = functools.partial(
        _ls_ce_kernel,
        smoothing=float(smoothing),
        inv_temp=1.0 / float(temperature),
        n_rows=n,
        tile_rows=tile_rows,
        n_classes=c,
    )

    out = pl.pallas_call(
        kernel,
        out_shape=jax.ShapeDtypeStruct((1, 1), jnp.float32),
        grid=grid,
        in_specs=[
            pl.BlockSpec((tile_rows, c), lambda i: (i, 0)),   # logits tile
            pl.BlockSpec((tile_rows, 1), lambda i: (i, 0)),   # targets tile
        ],
        out_specs=pl.BlockSpec(memory_space=pltpu.SMEM),      # scalar result
        scratch_shapes=[pltpu.SMEM((1,), jnp.float32)],       # running sum
        compiler_params=pltpu.CompilerParams(
            dimension_semantics=("arbitrary",)),
    )(x, t2)
    return out[0, 0]


def _reference(x, target, smoothing=0.1, temperature=1.0):
    log_probs = jax.nn.log_softmax(x.astype(jnp.float32) / temperature, axis=-1)
    nll = -jnp.take_along_axis(log_probs, target[:, None], axis=-1)[:, 0]
    smooth = -jnp.mean(log_probs, axis=-1)
    return jnp.mean((1.0 - smoothing) * nll + smoothing * smooth)


if __name__ == "__main__":
    key = jax.random.PRNGKey(0)

    # Case 1: the original small f32 shape (single tile, full-dim block).
    k1, k2, k3, k4 = jax.random.split(key, 4)
    N1, C1 = 8, 32
    x1 = jax.random.normal(k1, (N1, C1), dtype=jnp.float32)
    t1 = jax.random.randint(k2, (N1,), 0, C1, dtype=jnp.int32)
    loss1 = jax.block_until_ready(
        label_smoothing_cross_entropy(x1, t1, smoothing=0.1, temperature=1.0))
    ref1 = _reference(x1, t1, smoothing=0.1, temperature=1.0)
    assert jnp.allclose(loss1, ref1, atol=1e-5, rtol=1e-5), (loss1, ref1)

    # Case 2: bf16 logits, multi-tile grid with a partial last tile
    # (exercises the accumulator, row masking, and bf16 ingress path).
    N2, C2 = 40, 256
    x2 = jax.random.normal(k3, (N2, C2), dtype=jnp.float32).astype(jnp.bfloat16)
    t2 = jax.random.randint(k4, (N2,), 0, C2, dtype=jnp.int32)
    loss2 = jax.block_until_ready(
        label_smoothing_cross_entropy(x2, t2, smoothing=0.1, temperature=2.0,
                                      tile_rows=16))
    ref2 = _reference(x2, t2, smoothing=0.1, temperature=2.0)
    assert jnp.allclose(loss2, ref2, atol=1e-4, rtol=1e-4), (loss2, ref2)

    print("KERNEL_OK")
</pallas_src>

<mosaic_0001>
module attributes {stable_mosaic.version = 11 : i64} {
  func.func @_ls_ce_kernel(%arg0: i32, %arg1: memref<8x32xf32, #tpu.memory_space<vmem>>, %arg2: memref<8x1xi32, #tpu.memory_space<vmem>>, %arg3: memref<1x1xf32, #tpu.memory_space<smem>>, %arg4: memref<1xf32, #tpu.memory_space<smem>>) attributes {dimension_semantics = [#tpu.dimension_semantics<arbitrary>], iteration_bounds = array<i64: 1>, scalar_prefetch = 0 : i64, scratch_operands = 1 : i64, tpu.core_type = #tpu.core_type<tc>, window_params = [{transform_indices = @transform_0, window_bounds = array<i64: 8, 32>}, {transform_indices = @transform_1, window_bounds = array<i64: 8, 1>}, {transform_indices = @transform_2, window_bounds = array<i64: 1, 1>}]} {
    %c0_i32 = arith.constant 0 : i32
    %0 = arith.cmpi eq, %arg0, %c0_i32 : i32
    %1 = arith.extui %0 : i1 to i32
    %c0_i32_0 = arith.constant 0 : i32
    %2 = arith.cmpi ne, %1, %c0_i32_0 : i32
    scf.if %2 {
      %cst_18 = arith.constant 0.000000e+00 : f32
      %c0_19 = arith.constant 0 : index
      %48 = memref.load %arg4[%c0_19] : memref<1xf32, #tpu.memory_space<smem>>
      memref.store %cst_18, %arg4[%c0_19] : memref<1xf32, #tpu.memory_space<smem>>
    } else {
    }
    %c0 = arith.constant 0 : index
    %c0_1 = arith.constant 0 : index
    %3 = vector.load %arg1[%c0, %c0_1] : memref<8x32xf32, #tpu.memory_space<vmem>>, vector<8x32xf32>
    %cst = arith.constant 1.000000e+00 : f32
    %4 = vector.broadcast %cst : f32 to vector<8x32xf32>
    %5 = arith.mulf %3, %4 : vector<8x32xf32>
    %cst_2 = arith.constant dense<0xFF800000> : vector<8xf32>
    %6 = vector.multi_reduction <maximumf>, %5, %cst_2 [1] : vector<8x32xf32> to vector<8xf32>
    %7 = vector.shape_cast %6 : vector<8xf32> to vector<8x1xf32>
    %8 = vector.broadcast %7 : vector<8x1xf32> to vector<8x32xf32>
    %9 = arith.subf %5, %8 : vector<8x32xf32>
    %10 = math.exp %9 : vector<8x32xf32>
    %cst_3 = arith.constant dense<0.000000e+00> : vector<8xf32>
    %11 = vector.multi_reduction <add>, %10, %cst_3 [1] : vector<8x32xf32> to vector<8xf32>
    %12 = vector.shape_cast %11 : vector<8xf32> to vector<8x1xf32>
    %13 = math.log %12 : vector<8x1xf32>
    %cst_4 = arith.constant dense<0.000000e+00> : vector<8xf32>
    %14 = vector.multi_reduction <add>, %9, %cst_4 [1] : vector<8x32xf32> to vector<8xf32>
    %15 = vector.shape_cast %14 : vector<8xf32> to vector<8x1xf32>
    %16 = tpu.iota {dimensions = array<i32: 1>} : vector<8x32xi32>
    %c0_5 = arith.constant 0 : index
    %c0_6 = arith.constant 0 : index
    %17 = vector.load %arg2[%c0_5, %c0_6] : memref<8x1xi32, #tpu.memory_space<vmem>>, vector<8x1xi32>
    %18 = vector.broadcast %17 : vector<8x1xi32> to vector<8x32xi32>
    %19 = arith.cmpi eq, %16, %18 : vector<8x32xi32>
    %cst_7 = arith.constant 0.000000e+00 : f32
    %20 = vector.broadcast %cst_7 : f32 to vector<8x32xf32>
    %21 = arith.select %19, %9, %20 : vector<8x32xi1>, vector<8x32xf32>
    %cst_8 = arith.constant dense<0.000000e+00> : vector<8xf32>
    %22 = vector.multi_reduction <add>, %21, %cst_8 [1] : vector<8x32xf32> to vector<8xf32>
    %23 = vector.shape_cast %22 : vector<8xf32> to vector<8x1xf32>
    %cst_9 = arith.constant 0.899999976 : f32
    %24 = vector.broadcast %cst_9 : f32 to vector<8x1xf32>
    %25 = arith.mulf %24, %23 : vector<8x1xf32>
    %cst_10 = arith.constant 3.125000e-03 : f32
    %26 = vector.broadcast %cst_10 : f32 to vector<8x1xf32>
    %27 = arith.mulf %26, %15 : vector<8x1xf32>
    %28 = arith.addf %25, %27 : vector<8x1xf32>
    %29 = arith.subf %13, %28 : vector<8x1xf32>
    %c8_i32 = arith.constant 8 : i32
    %30 = arith.muli %arg0, %c8_i32 : i32
    %31 = tpu.iota {dimensions = array<i32: 0>} : vector<8x1xi32>
    %32 = vector.broadcast %30 : i32 to vector<8x1xi32>
    %33 = arith.addi %32, %31 : vector<8x1xi32>
    %c8_i32_11 = arith.constant 8 : i32
    %34 = vector.broadcast %c8_i32_11 : i32 to vector<8x1xi32>
    %35 = arith.cmpi slt, %33, %34 : vector<8x1xi32>
    %cst_12 = arith.constant 0.000000e+00 : f32
    %36 = vector.broadcast %cst_12 : f32 to vector<8x1xf32>
    %37 = arith.select %35, %29, %36 : vector<8x1xi1>, vector<8x1xf32>
    %c0_13 = arith.constant 0 : index
    %38 = memref.load %arg4[%c0_13] : memref<1xf32, #tpu.memory_space<smem>>
    %39 = vector.shape_cast %37 : vector<8x1xf32> to vector<1x8x1xf32>
    %cst_14 = arith.constant dense<0.000000e+00> : vector<1xf32>
    %40 = vector.multi_reduction <add>, %39, %cst_14 [1, 2] : vector<1x8x1xf32> to vector<1xf32>
    %41 = vector.shape_cast %40 : vector<1xf32> to vector<1x1x1xf32>
    %42 = vector.extract %41[0, 0, 0] : f32 from vector<1x1x1xf32>
    %43 = arith.addf %38, %42 : f32
    %c0_15 = arith.constant 0 : index
    %44 = memref.load %arg4[%c0_15] : memref<1xf32, #tpu.memory_space<smem>>
    memref.store %43, %arg4[%c0_15] : memref<1xf32, #tpu.memory_space<smem>>
    %c0_i32_16 = arith.constant 0 : i32
    %45 = arith.cmpi eq, %arg0, %c0_i32_16 : i32
    %46 = arith.extui %45 : i1 to i32
    %c0_i32_17 = arith.constant 0 : i32
    %47 = arith.cmpi ne, %46, %c0_i32_17 : i32
    scf.if %47 {
      %c0_18 = arith.constant 0 : index
      %48 = memref.load %arg4[%c0_18] : memref<1xf32, #tpu.memory_space<smem>>
      %cst_19 = arith.constant 1.250000e-01 : f32
      %49 = arith.mulf %48, %cst_19 : f32
      %c0_20 = arith.constant 0 : index
      %c0_21 = arith.constant 0 : index
      %50 = memref.load %arg3[%c0_20, %c0_21] : memref<1x1xf32, #tpu.memory_space<smem>>
      memref.store %49, %arg3[%c0_20, %c0_21] : memref<1x1xf32, #tpu.memory_space<smem>>
    } else {
    }
    return
  }
  func.func @transform_0(%arg0: i32) -> (i32, i32) {
    %c0_i32 = arith.constant 0 : i32
    %c0_i32_0 = arith.constant 0 : i32
    return %arg0, %c0_i32 : i32, i32
  }
  func.func @transform_1(%arg0: i32) -> (i32, i32) {
    %c0_i32 = arith.constant 0 : i32
    %c0_i32_0 = arith.constant 0 : i32
    return %arg0, %c0_i32 : i32, i32
  }
  func.func @transform_2(%arg0: i32) -> (i32, i32) {
    %c0_i32 = arith.constant 0 : i32
    %c0_i32_0 = arith.constant 0 : i32
    %c0_i32_1 = arith.constant 0 : i32
    return %c0_i32, %c0_i32_0 : i32, i32
  }
}

</mosaic_0001>

<llo_original>
// kernel: tpu_custom_call.1
$region0: #{tpu_custom_call.1}
  #allocation0 [shape = 'u32[]', space=smem, size = 0x4, offset = 0x4, fixed_abs, tag = 'smem constant byte address 0x4 - core index']
  #allocation1 [shape = 'u32[144,128]{1,0:T(1,128)}', space=vmem, size = 0x12000, scoped, tag = 'internal scratch']
  #allocation2 [shape = 'f32[1]{0:T(128)}', space=smem, size = 0x200, scoped, tag = 'scratch operand']
  %s0 = inlined_call_operand.vmem [shape: f32[8,32], index: 0, kind: input, shape index: {}]
  %s1 = inlined_call_operand.vmem [shape: s32[8,1], index: 1, kind: input, shape index: {}]
  %s2 = inlined_call_operand.hbm [shape: f32[1,1], index: 2, kind: output, shape index: {}]
  %s3 = sld [smem:[#allocation0]]
  $region26: #{tpu_custom_call.1} parent=0
    _
  %s5 = ssub.s32 1, %s3
  %s6 = scalar_select 0, %s5, %s3
  $region1: #{tpu_custom_call.1} parent=0
    #allocation3 [shape = 'u8[512]{0}', space=smem, size = 0x200, scoped, tag = 'output window, operand 0, single buffered']
    #allocation4 [shape = 's32[1]{0}', space=sflag, size = 0x4, scoped, tag = 'scoped memory for tpu_custom_call.1']
    %7 = vsyncpa [#allocation4], 0
    // Predicated region
    $region2: #{tpu_custom_call.1} parent=1 // pred_check
      _
    $region3: #{tpu_custom_call.1} parent=1 // pred_check_branch
      %9 = sbr.rel (0) target = $region5
    $region4: #{tpu_custom_call.1} parent=1 // pred_region
      _
    $region5: #{tpu_custom_call.1} parent=1 // pred_fallthru
      _
    // Predicated region
    $region6: #{tpu_custom_call.1} parent=1 // pred_check
      _
    $region7: #{tpu_custom_call.1} parent=1 // pred_check_branch
      %11 = sbr.rel (0) target = $region9
    $region8: #{tpu_custom_call.1} parent=1 // pred_region
      _
    $region9: #{tpu_custom_call.1} parent=1 // pred_fallthru
      _
    %p12 = scmp.eq.s32.totalorder 0, 0
    // Predicated region
    $region10: #{tpu_custom_call.1} parent=1 // pred_check
      %p13 = pneg %p12
    $region11: #{tpu_custom_call.1} parent=1 // pred_check_branch
      %15 = sbr.rel (%p13) target = $region13
    $region12: #{tpu_custom_call.1} parent=1 // pred_region
      %s16 = scalar_lea.smem [#allocation2], 0
      %17 = sst [smem:[%s16]] 0.0
    $region13: #{tpu_custom_call.1} parent=1 // pred_fallthru
      _
    %v18 = vld [vmem:[%s0] sm:$0xff]
    %vm19 = vcmask 261120
    %v20 = vsel %vm19, %v18, -inf
    %21 = vmax.xlane.f32.xlu0 %v20
    %v22 = vpop.xlane.xlu0 %21
    %v23 = vsub.f32 %v18, %v22
    %v24 = vmul.f32 %v23, 1.442695
    %v25 = vpow.pop %v24
    %v26 = vsel %vm19, %v25, 0.0
    %27 = vadd.xlane.f32.xlu0 %v26
    %v28 = vpop.xlane.xlu0 %27
    %v29 = vlog2.pop %v28
    %v30 = vmul.f32 %v29, 0.6931472
    %v31 = vsel %vm19, %v23, 0.0
    %32 = vadd.xlane.f32.xlu0 %v31
    %v33 = vpop.xlane.xlu0 %32
    %v34 = vlaneseq
    %v35 = vand.u32 %v34, 127
    %v36 = vld [vmem:[%s1] sm:$0xff]
    %37 = vset.pattern.permute.xlu0 0
    %38 = vperm.xlu0 %37, %v36
    %v39 = vpop.permute.xlu0 %38
    %vm40 = vcmp.eq.s32.totalorder %v35, %v39
    %v41 = vsel %vm40, %v23, 0.0
    %v42 = vsel %vm19, %v41, 0.0
    %43 = vadd.xlane.f32.xlu0 %v42
    %v44 = vpop.xlane.xlu0 %43
    %v45 = vmul.f32 %v44, 0.9
    %v46 = vmul.f32 %v33, 0.003125
    %v47 = vadd.f32 %v45, %v46
    %v48 = vsub.f32 %v30, %v47
    %s49 = smul.u32 0, 8
    %v50 = vlaneseq
    %v51 = vshrl.u32 %v50, 7
    %v52 = vstv %s49
    %v53 = vadd.s32 %v52, %v51
    %vm54 = vcmp.lt.s32.totalorder %v53, 8
    %v55 = vsel %vm54, %v48, 0.0
    %s56 = sld [smem:[#allocation2]]
    %vm57 = vcmask 7168
    %v58 = vsel %vm57, %v55, 0.0
    %59 = vadd.xlane.f32.xlu0 %v58
    %v60 = vpop.xlane.xlu0 %59
    %v61 = vrot.slane %v60, 4
    %v62 = vadd.f32 %v60, %v61
    %v63 = vrot.slane %v62, 2
    %v64 = vadd.f32 %v62, %v63
    %v65 = vrot.slane %v64, 1
    %v66 = vadd.f32 %v64, %v65
    %s67 = vtos %v66
    %s68 = sadd.f32 %s56, %s67
    %s69 = scalar_lea.smem [#allocation2], 0
    %70 = sst [smem:[%s69]] %s68
    // Predicated region
    $region14: #{tpu_custom_call.1} parent=1 // pred_check
      %p71 = pneg %p12
    $region15: #{tpu_custom_call.1} parent=1 // pred_check_branch
      %73 = sbr.rel (%p71) target = $region17
    $region16: #{tpu_custom_call.1} parent=1 // pred_region
      %s74 = sld [smem:[#allocation2]]
      %s75 = smul.f32 %s74, 0.125
      %s76 = scalar_lea.smem [#allocation3], 0
      %77 = sst [smem:[%s76]] %s75
    $region17: #{tpu_custom_call.1} parent=1 // pred_fallthru
      _
    // Predicated region
    $region18: #{tpu_custom_call.1} parent=1 // pred_check
      _
    $region19: #{tpu_custom_call.1} parent=1 // pred_check_branch
      %79 = sbr.rel (0) target = $region21
    $region20: #{tpu_custom_call.1} parent=1 // pred_region
      %s81 = ssub.s32 16, 16
      %82 = vsyncadd [#allocation4], %s81
      %85 = dma.smem_to_hbm [#allocation3], 16, %s2, [#allocation4]
    $region21: #{tpu_custom_call.1} parent=1 // pred_fallthru
      _
    // Predicated region
    $region22: #{tpu_custom_call.1} parent=1 // pred_check
      _
    $region23: #{tpu_custom_call.1} parent=1 // pred_check_branch
      %87 = sbr.rel (0) target = $region25
    $region24: #{tpu_custom_call.1} parent=1 // pred_region
      %88 = dma.done [#allocation4], 16
    $region25: #{tpu_custom_call.1} parent=1 // pred_fallthru
      _
    %89 = sfence
    %90 = vsyncpa [#allocation4], 1

</llo_original>
